<compile_context>
chip_gen: v6e
topology: v6e:2x2x1
jax: 0.10.0
libtpu: 0.0.40
codegen_flags: <defaults>
</compile_context>

<pallas_src>
import jax
import jax.numpy as jnp
from jax.experimental import pallas as pl
from jax.experimental.pallas import tpu as pltpu

_NEG_BIG = -1e30  # finite "masked" score: exp underflows to 0, never NaN


def _bahdanau_kernel(lens_ref,   # scalar-prefetch: (B,) int32 in SMEM
                     wsq_ref,    # (1, T, H)  compute dtype : query @ W_s^T
                     qwq_ref,    # (1, T, H)  f32           : query @ W_out[:, H:]^T
                     whe_ref,    # (1, Sc, H) compute dtype : enc @ W_h^T (chunk)
                     enc_ref,    # (1, Sc, H) matmul dtype  : encoder outputs (chunk)
                     v_ref,      # (1, H)     compute dtype
                     wct_ref,    # (H, H)     matmul dtype  : W_out[:, :H]^T
                     out_ref,    # (1, T, H)
                     m_scr,      # (T, 1) f32  running max
                     l_scr,      # (T, 1) f32  running sum
                     acc_scr):   # (T, H) f32  running (unnormalized) context
    b = pl.program_id(0)
    s = pl.program_id(1)
    num_s = pl.num_programs(1)
    s_chunk = enc_ref.shape[1]

    @pl.when(s == 0)
    def _init():
        m_scr[...] = jnp.full_like(m_scr, _NEG_BIG)
        l_scr[...] = jnp.zeros_like(l_scr)
        acc_scr[...] = jnp.zeros_like(acc_scr)

    length = lens_ref[b]

    # Skip fully-masked (padding-only) source chunks entirely: their
    # contribution is exactly p == 0, so no tanh cube / exp / MXU work.
    @pl.when(s * s_chunk < length)
    def _compute():
        wsq = wsq_ref[0]                                   # (T, H)
        whe = whe_ref[0]                                   # (Sc, H)
        enc = enc_ref[0]                                   # (Sc, H)

        # scores[t, j] = v . tanh(W_s q_t + W_h h_j), this chunk only.
        # Elementwise/tanh in compute dtype (bf16 on v6e/v7x); the lane-axis
        # reduce and everything downstream accumulate in f32.
        e = jnp.tanh(wsq[:, None, :] + whe[None, :, :])    # (T, Sc, H)
        scores = jnp.sum((e * v_ref[...]).astype(jnp.float32), axis=-1)  # (T, Sc)

        # Mask padded / out-of-length source positions in this chunk.
        col = jax.lax.broadcasted_iota(jnp.int32, scores.shape, 1) + s * s_chunk
        scores = jnp.where(col < length, scores, _NEG_BIG)

        # Online softmax update (state kept in f32).
        m_prev = m_scr[...]                                              # (T, 1)
        m_new = jnp.maximum(m_prev, jnp.max(scores, axis=-1, keepdims=True))
        alpha = jnp.exp(m_prev - m_new)                                  # (T, 1)
        p = jnp.exp(scores - m_new)                                      # (T, Sc)
        l_scr[...] = alpha * l_scr[...] + jnp.sum(p, axis=-1, keepdims=True)
        acc_scr[...] = alpha * acc_scr[...] + jnp.dot(
            p.astype(enc_ref.dtype), enc, preferred_element_type=jnp.float32)
        m_scr[...] = m_new

    @pl.when(s == num_s - 1)
    def _finalize():
        # Normalization folded into the (T, H) accumulator, one divide total.
        ctx = acc_scr[...] * pl.reciprocal(l_scr[...], approx=False)
        out = jnp.tanh(
            jnp.dot(ctx.astype(wct_ref.dtype), wct_ref[...],
                    preferred_element_type=jnp.float32)
            + qwq_ref[0])
        out_ref[0] = out.astype(out_ref.dtype)


def _proj(x, w, dt):
    """x: (B, L, H_in) @ w^T where w is PyTorch-Linear (H_out, H_in). f32 accum."""
    return jax.lax.dot_general(
        x.astype(dt), w.astype(dt),
        dimension_numbers=(((2,), (1,)), ((), ())),
        preferred_element_type=jnp.float32)


def _tpu_config():
    """(vmem_capacity_bytes, native bf16 VPU/EUP?) with safe fallbacks."""
    vmem = 128 * 1024 * 1024
    try:
        vmem = int(pltpu.get_tpu_info().vmem_capacity_bytes)
    except Exception:
        pass
    kind = ""
    try:
        kind = jax.devices()[0].device_kind.lower()
    except Exception:
        pass
    # v5e and older: no bf16 VPU/EUP. v6e / v7x: native bf16 elementwise.
    native_bf16_ew = not any(t in kind for t in ("v2", "v3", "v4", "v5"))
    return vmem, native_bf16_ew


def _choose_s_chunk(T, S, H, c_esize, m_esize, vmem_bytes):
    """Pick the source chunk from a generation-aware VMEM budget.

    Per-source-element cost: double-buffered streamed blocks (whe, enc) plus
    the (T, chunk, H) tanh intermediate and its f32-cast for the reduce."""
    per_sc = 2 * H * c_esize + 2 * H * m_esize + T * H * (c_esize + 4)
    budget = max(vmem_bytes // 6, 4 * 1024 * 1024)   # ~10 MiB v7x, ~21 MiB v5e/v6e
    align = 256 if c_esize < 4 else 128              # MXU K width: v6e/v7x vs v5e
    # Single chunk (no online-softmax loop) if the padded source fits easily.
    s_small = -(-S // 16) * 16
    if s_small * per_sc <= budget and s_small <= 2048:
        return s_small, s_small
    c = budget // per_sc
    c = int(max(align, min(2048, (c // align) * align)))
    s_pad = -(-S // c) * c
    return c, s_pad


def bahdanau_attention(query, encoder_outputs, src_lengths,
                       W_h, W_s, v, W_out,
                       *, matmul_dtype=jnp.bfloat16, compute_dtype=None,
                       s_chunk=None):
    """query: (B, T, H); encoder_outputs: (B, S, H); src_lengths: (B,).
    Weights use PyTorch nn.Linear layout (out_features, in_features):
      W_h, W_s: (H, H); v: (1, H); W_out: (H, 2H).
    matmul_dtype: MXU operand dtype (f32 accumulation regardless).
    compute_dtype: elementwise/tanh dtype; None = bf16 on v6e/v7x, f32 on v5e."""
    B, T, H = query.shape
    _, S, _ = encoder_outputs.shape

    vmem_cap, bf16_ok = _tpu_config()
    if compute_dtype is None:
        compute_dtype = jnp.bfloat16 if bf16_ok else jnp.float32
    c_esize = jnp.dtype(compute_dtype).itemsize
    m_esize = jnp.dtype(matmul_dtype).itemsize

    if s_chunk is None:
        s_chunk, s_pad = _choose_s_chunk(T, S, H, c_esize, m_esize, vmem_cap)
    else:
        s_chunk = int(s_chunk)
        s_pad = -(-S // s_chunk) * s_chunk
    num_s = s_pad // s_chunk
    # 3/4 of physical VMEM: 48 MiB on v7x (64 MiB), 96 MiB on v5e/v6e (128 MiB).
    vmem_limit = int(min((vmem_cap * 3) // 4, 96 * 1024 * 1024))

    enc = encoder_outputs
    if s_pad != S:
        enc = jnp.pad(enc, ((0, 0), (0, s_pad - S), (0, 0)))

    # Hoisted dense projections: plain XLA batched GEMMs (bf16 operands on the
    # MXU, f32 accumulation); keeps W_h / W_s out of kernel VMEM.
    ws_q = _proj(query, W_s, matmul_dtype).astype(compute_dtype)    # (B, T, H)
    wh_enc = _proj(enc, W_h, matmul_dtype).astype(compute_dtype)    # (B, s_pad, H)
    q_wq = _proj(query, W_out[:, H:], matmul_dtype)                 # (B, T, H) f32

    wct = jnp.transpose(W_out[:, :H]).astype(matmul_dtype)          # (H, H) = Wc^T
    v2d = v.reshape(1, H).astype(compute_dtype)
    enc_k = enc.astype(matmul_dtype)
    lens = src_lengths.astype(jnp.int32)

    def _q_map(b, s, lens_ref):
        return (b, 0, 0)

    def _src_map(b, s, lens_ref):
        # DMA skip: past the last valid chunk of this row, keep returning the
        # last valid block index so Pallas elides the HBM->VMEM copy (compute
        # for those steps is skipped in-kernel).  max(...,0) guards length==0.
        last = jnp.maximum(pl.cdiv(lens_ref[b], s_chunk) - 1, 0)
        return (b, jnp.minimum(s, last), 0)

    grid_spec = pltpu.PrefetchScalarGridSpec(
        num_scalar_prefetch=1,
        grid=(B, num_s),
        in_specs=[
            pl.BlockSpec((1, T, H), _q_map),                        # ws_q
            pl.BlockSpec((1, T, H), _q_map),                        # q_wq
            pl.BlockSpec((1, s_chunk, H), _src_map),                # wh_enc
            pl.BlockSpec((1, s_chunk, H), _src_map),                # enc
            pl.BlockSpec((1, H), lambda b, s, lens_ref: (0, 0)),    # v
            pl.BlockSpec((H, H), lambda b, s, lens_ref: (0, 0)),    # Wc^T
        ],
        out_specs=pl.BlockSpec((1, T, H), _q_map),
        scratch_shapes=[
            pltpu.VMEM((T, 1), jnp.float32),   # running max
            pltpu.VMEM((T, 1), jnp.float32),   # running sum
            pltpu.VMEM((T, H), jnp.float32),   # running context accumulator
        ],
    )

    return pl.pallas_call(
        _bahdanau_kernel,
        out_shape=jax.ShapeDtypeStruct((B, T, H), query.dtype),
        grid_spec=grid_spec,
        compiler_params=pltpu.CompilerParams(
            # Batch axis parallel (megacore); source-chunk reduction axis last
            # and arbitrary so the online-softmax state stays resident.
            dimension_semantics=("parallel", "arbitrary"),
            vmem_limit_bytes=vmem_limit,
        ),
    )(lens, ws_q, q_wq, wh_enc, enc_k, v2d, wct)


def _reference(query, encoder_outputs, src_lengths, W_h, W_s, v, W_out):
    # pure-JAX replica of the PyTorch forward
    Wh_enc = encoder_outputs @ W_h.T
    Ws_q = query @ W_s.T
    e = jnp.tanh(Ws_q[:, :, None, :] + Wh_enc[:, None, :, :])
    scores = jnp.einsum("btsh,h->bts", e, v.reshape(-1))
    S = encoder_outputs.shape[1]
    mask = jnp.arange(S)[None, :] < src_lengths[:, None]
    scores = jnp.where(mask[:, None, :], scores, -jnp.inf)
    attn = jax.nn.softmax(scores, axis=-1)
    context = jnp.einsum("bts,bsh->bth", attn, encoder_outputs)
    combined = jnp.concatenate([context, query], axis=-1)
    return jnp.tanh(combined @ W_out.T)


def _make_inputs(key, B, T, S, H):
    k1, k2, k3, k4, k5, k6 = jax.random.split(key, 6)
    query = jax.random.normal(k1, (B, T, H), dtype=jnp.float32)
    enc = jax.random.normal(k2, (B, S, H), dtype=jnp.float32)
    scale = 1.0 / float(jnp.sqrt(H))
    W_h = jax.random.uniform(k3, (H, H), jnp.float32, -scale, scale)
    W_s = jax.random.uniform(k4, (H, H), jnp.float32, -scale, scale)
    v_w = jax.random.uniform(k5, (1, H), jnp.float32, -scale, scale)
    s2 = 1.0 / float(jnp.sqrt(2 * H))
    W_out = jax.random.uniform(k6, (H, 2 * H), jnp.float32, -s2, s2)
    return query, enc, W_h, W_s, v_w, W_out


if __name__ == "__main__":
    key = jax.random.PRNGKey(0)

    # Case 1: small shapes, single source chunk, f32 everywhere -> tight check.
    B, T, S, H = 2, 8, 12, 32
    q, enc, W_h, W_s, v_w, W_out = _make_inputs(jax.random.fold_in(key, 1), B, T, S, H)
    lens = jnp.array([12, 7], dtype=jnp.int32)
    out = bahdanau_attention(q, enc, lens, W_h, W_s, v_w, W_out,
                             matmul_dtype=jnp.float32, compute_dtype=jnp.float32)
    out = jax.block_until_ready(out)
    ref = _reference(q, enc, lens, W_h, W_s, v_w, W_out)
    assert out.shape == (B, T, H)
    assert jnp.allclose(out, ref, atol=1e-5, rtol=1e-5)

    # Case 2: longer ragged source, forced multi-chunk online softmax with
    # masked-chunk compute + DMA skipping; default (bf16-where-native) dtypes.
    B2, T2, S2, H2 = 2, 8, 160, 32
    q2, enc2, W_h2, W_s2, v_w2, W_out2 = _make_inputs(jax.random.fold_in(key, 2), B2, T2, S2, H2)
    lens2 = jnp.array([137, 64], dtype=jnp.int32)
    out2 = bahdanau_attention(q2, enc2, lens2, W_h2, W_s2, v_w2, W_out2, s_chunk=128)
    out2 = jax.block_until_ready(out2)
    ref2 = _reference(q2, enc2, lens2, W_h2, W_s2, v_w2, W_out2)
    assert out2.shape == (B2, T2, H2)
    # bf16 elementwise / MXU path on v6e/v7x -> relaxed tolerance.
    assert jnp.allclose(out2, ref2, atol=3e-2, rtol=3e-2)

    print("KERNEL_OK")
</pallas_src>

<mosaic_0001>
module attributes {stable_mosaic.version = 11 : i64} {
  func.func @_bahdanau_kernel(%arg0: i32, %arg1: i32, %arg2: memref<2xi32, #tpu.memory_space<smem>>, %arg3: memref<1x8x32xf32, #tpu.memory_space<vmem>>, %arg4: memref<1x8x32xf32, #tpu.memory_space<vmem>>, %arg5: memref<1x16x32xf32, #tpu.memory_space<vmem>>, %arg6: memref<1x16x32xf32, #tpu.memory_space<vmem>>, %arg7: memref<1x32xf32, #tpu.memory_space<vmem>>, %arg8: memref<32x32xf32, #tpu.memory_space<vmem>>, %arg9: memref<1x8x32xf32, #tpu.memory_space<vmem>>, %arg10: memref<8x1xf32, #tpu.memory_space<vmem>>, %arg11: memref<8x1xf32, #tpu.memory_space<vmem>>, %arg12: memref<8x32xf32, #tpu.memory_space<vmem>>) attributes {dimension_semantics = [#tpu.dimension_semantics<parallel>, #tpu.dimension_semantics<arbitrary>], iteration_bounds = array<i64: 2, 1>, scalar_prefetch = 1 : i64, scratch_operands = 3 : i64, tpu.core_type = #tpu.core_type<tc>, window_params = [{transform_indices = @transform_0, window_bounds = array<i64: 1, 8, 32>}, {transform_indices = @transform_1, window_bounds = array<i64: 1, 8, 32>}, {transform_indices = @transform_2, window_bounds = array<i64: 1, 16, 32>}, {transform_indices = @transform_3, window_bounds = array<i64: 1, 16, 32>}, {pipeline_mode = #tpu.pipeline_mode<synchronous>, transform_indices = @transform_4, window_bounds = array<i64: 1, 32>}, {pipeline_mode = #tpu.pipeline_mode<synchronous>, transform_indices = @transform_5, window_bounds = array<i64: 32, 32>}, {transform_indices = @transform_6, window_bounds = array<i64: 1, 8, 32>}]} {
    %c0_i32 = arith.constant 0 : i32
    %0 = arith.cmpi eq, %arg1, %c0_i32 : i32
    %1 = arith.extui %0 : i1 to i32
    %c0_i32_0 = arith.constant 0 : i32
    %2 = arith.cmpi ne, %1, %c0_i32_0 : i32
    scf.if %2 {
      %cst = arith.constant -1.000000e+30 : f32
      %12 = vector.broadcast %cst : f32 to vector<8x1xf32>
      %c0 = arith.constant 0 : index
      %c0_4 = arith.constant 0 : index
      %13 = vector.load %arg10[%c0, %c0_4] : memref<8x1xf32, #tpu.memory_space<vmem>>, vector<8x1xf32>
      tpu.vector_store %arg10[%c0, %c0_4], %12 {strides = array<i32>} : memref<8x1xf32, #tpu.memory_space<vmem>>, vector<8x1xf32>,
      %cst_5 = arith.constant 0.000000e+00 : f32
      %14 = vector.broadcast %cst_5 : f32 to vector<8x1xf32>
      %c0_6 = arith.constant 0 : index
      %c0_7 = arith.constant 0 : index
      %15 = vector.load %arg11[%c0_6, %c0_7] : memref<8x1xf32, #tpu.memory_space<vmem>>, vector<8x1xf32>
      tpu.vector_store %arg11[%c0_6, %c0_7], %14 {strides = array<i32>} : memref<8x1xf32, #tpu.memory_space<vmem>>, vector<8x1xf32>,
      %cst_8 = arith.constant 0.000000e+00 : f32
      %16 = vector.broadcast %cst_8 : f32 to vector<8x32xf32>
      %c0_9 = arith.constant 0 : index
      %c0_10 = arith.constant 0 : index
      %17 = vector.load %arg12[%c0_9, %c0_10] : memref<8x32xf32, #tpu.memory_space<vmem>>, vector<8x32xf32>
      tpu.vector_store %arg12[%c0_9, %c0_10], %16 {strides = array<i32>} : memref<8x32xf32, #tpu.memory_space<vmem>>, vector<8x32xf32>,
    } else {
    }
    %3 = arith.index_cast %arg0 : i32 to index
    %4 = memref.load %arg2[%3] : memref<2xi32, #tpu.memory_space<smem>>
    %c16_i32 = arith.constant 16 : i32
    %5 = arith.muli %arg1, %c16_i32 : i32
    %6 = arith.cmpi slt, %5, %4 : i32
    %7 = arith.extui %6 : i1 to i32
    %c0_i32_1 = arith.constant 0 : i32
    %8 = arith.cmpi ne, %7, %c0_i32_1 : i32
    scf.if %8 {
      %c0 = arith.constant 0 : index
      %c0_4 = arith.constant 0 : index
      %c0_5 = arith.constant 0 : index
      %12 = vector.load %arg3[%c0, %c0_4, %c0_5] : memref<1x8x32xf32, #tpu.memory_space<vmem>>, vector<1x8x32xf32>
      %13 = vector.shape_cast %12 : vector<1x8x32xf32> to vector<8x32xf32>
      %c0_6 = arith.constant 0 : index
      %c0_7 = arith.constant 0 : index
      %c0_8 = arith.constant 0 : index
      %14 = vector.load %arg5[%c0_6, %c0_7, %c0_8] : memref<1x16x32xf32, #tpu.memory_space<vmem>>, vector<1x16x32xf32>
      %15 = vector.shape_cast %14 : vector<1x16x32xf32> to vector<16x32xf32>
      %c0_9 = arith.constant 0 : index
      %c0_10 = arith.constant 0 : index
      %c0_11 = arith.constant 0 : index
      %16 = vector.load %arg6[%c0_9, %c0_10, %c0_11] : memref<1x16x32xf32, #tpu.memory_space<vmem>>, vector<1x16x32xf32>
      %17 = vector.shape_cast %16 : vector<1x16x32xf32> to vector<16x32xf32>
      %18 = vector.shape_cast %13 : vector<8x32xf32> to vector<8x1x32xf32>
      %19 = vector.shape_cast %15 : vector<16x32xf32> to vector<1x16x32xf32>
      %20 = vector.broadcast %18 : vector<8x1x32xf32> to vector<8x16x32xf32>
      %21 = vector.broadcast %19 : vector<1x16x32xf32> to vector<8x16x32xf32>
      %22 = arith.addf %20, %21 : vector<8x16x32xf32>
      %23 = math.tanh %22 : vector<8x16x32xf32>
      %c0_12 = arith.constant 0 : index
      %c0_13 = arith.constant 0 : index
      %24 = vector.load %arg7[%c0_12, %c0_13] : memref<1x32xf32, #tpu.memory_space<vmem>>, vector<1x32xf32>
      %25 = vector.shape_cast %24 : vector<1x32xf32> to vector<1x1x32xf32>
      %26 = vector.broadcast %25 : vector<1x1x32xf32> to vector<8x16x32xf32>
      %27 = arith.mulf %23, %26 : vector<8x16x32xf32>
      %cst = arith.constant dense<0.000000e+00> : vector<8x16xf32>
      %28 = vector.multi_reduction <add>, %27, %cst [2] : vector<8x16x32xf32> to vector<8x16xf32>
      %29 = tpu.iota {dimensions = array<i32: 1>} : vector<8x16xi32>
      %c16_i32_14 = arith.constant 16 : i32
      %30 = arith.muli %arg1, %c16_i32_14 : i32
      %31 = vector.broadcast %30 : i32 to vector<8x16xi32>
      %32 = arith.addi %29, %31 : vector<8x16xi32>
      %33 = vector.broadcast %4 : i32 to vector<8x16xi32>
      %34 = arith.cmpi slt, %32, %33 : vector<8x16xi32>
      %cst_15 = arith.constant -1.000000e+30 : f32
      %35 = vector.broadcast %cst_15 : f32 to vector<8x16xf32>
      %36 = arith.select %34, %28, %35 : vector<8x16xi1>, vector<8x16xf32>
      %c0_16 = arith.constant 0 : index
      %c0_17 = arith.constant 0 : index
      %37 = vector.load %arg10[%c0_16, %c0_17] : memref<8x1xf32, #tpu.memory_space<vmem>>, vector<8x1xf32>
      %cst_18 = arith.constant dense<0xFF800000> : vector<8xf32>
      %38 = vector.multi_reduction <maximumf>, %36, %cst_18 [1] : vector<8x16xf32> to vector<8xf32>
      %39 = vector.shape_cast %38 : vector<8xf32> to vector<8x1xf32>
      %40 = arith.maximumf %37, %39 : vector<8x1xf32>
      %41 = arith.subf %37, %40 : vector<8x1xf32>
      %42 = math.exp %41 : vector<8x1xf32>
      %43 = vector.broadcast %40 : vector<8x1xf32> to vector<8x16xf32>
      %44 = arith.subf %36, %43 : vector<8x16xf32>
      %45 = math.exp %44 : vector<8x16xf32>
      %c0_19 = arith.constant 0 : index
      %c0_20 = arith.constant 0 : index
      %46 = vector.load %arg11[%c0_19, %c0_20] : memref<8x1xf32, #tpu.memory_space<vmem>>, vector<8x1xf32>
      %47 = arith.mulf %42, %46 : vector<8x1xf32>
      %cst_21 = arith.constant dense<0.000000e+00> : vector<8xf32>
      %48 = vector.multi_reduction <add>, %45, %cst_21 [1] : vector<8x16xf32> to vector<8xf32>
      %49 = vector.shape_cast %48 : vector<8xf32> to vector<8x1xf32>
      %50 = arith.addf %47, %49 : vector<8x1xf32>
      %c0_22 = arith.constant 0 : index
      %c0_23 = arith.constant 0 : index
      %51 = vector.load %arg11[%c0_22, %c0_23] : memref<8x1xf32, #tpu.memory_space<vmem>>, vector<8x1xf32>
      tpu.vector_store %arg11[%c0_22, %c0_23], %50 {strides = array<i32>} : memref<8x1xf32, #tpu.memory_space<vmem>>, vector<8x1xf32>,
      %c0_24 = arith.constant 0 : index
      %c0_25 = arith.constant 0 : index
      %52 = vector.load %arg12[%c0_24, %c0_25] : memref<8x32xf32, #tpu.memory_space<vmem>>, vector<8x32xf32>
      %53 = vector.broadcast %42 : vector<8x1xf32> to vector<8x32xf32>
      %54 = arith.mulf %53, %52 : vector<8x32xf32>
      %cst_26 = arith.constant dense<0.000000e+00> : vector<8x32xf32>
      %55 = tpu.matmul %45, %17, %cst_26 {dimension_numbers = #tpu.dot_dimension_numbers<[1], [0], [0], [1], [0, 0, 1, 1], [], []>} : vector<8x16xf32>, vector<16x32xf32>, vector<8x32xf32> -> vector<8x32xf32>
      %56 = arith.addf %54, %55 : vector<8x32xf32>
      %c0_27 = arith.constant 0 : index
      %c0_28 = arith.constant 0 : index
      %57 = vector.load %arg12[%c0_27, %c0_28] : memref<8x32xf32, #tpu.memory_space<vmem>>, vector<8x32xf32>
      tpu.vector_store %arg12[%c0_27, %c0_28], %56 {strides = array<i32>} : memref<8x32xf32, #tpu.memory_space<vmem>>, vector<8x32xf32>,
      %c0_29 = arith.constant 0 : index
      %c0_30 = arith.constant 0 : index
      %58 = vector.load %arg10[%c0_29, %c0_30] : memref<8x1xf32, #tpu.memory_space<vmem>>, vector<8x1xf32>
      tpu.vector_store %arg10[%c0_29, %c0_30], %40 {strides = array<i32>} : memref<8x1xf32, #tpu.memory_space<vmem>>, vector<8x1xf32>,
    } else {
    }
    %c0_i32_2 = arith.constant 0 : i32
    %9 = arith.cmpi eq, %arg1, %c0_i32_2 : i32
    %10 = arith.extui %9 : i1 to i32
    %c0_i32_3 = arith.constant 0 : i32
    %11 = arith.cmpi ne, %10, %c0_i32_3 : i32
    scf.if %11 {
      %c0 = arith.constant 0 : index
      %c0_4 = arith.constant 0 : index
      %12 = vector.load %arg12[%c0, %c0_4] : memref<8x32xf32, #tpu.memory_space<vmem>>, vector<8x32xf32>
      %c0_5 = arith.constant 0 : index
      %c0_6 = arith.constant 0 : index
      %13 = vector.load %arg11[%c0_5, %c0_6] : memref<8x1xf32, #tpu.memory_space<vmem>>, vector<8x1xf32>
      %14 = tpu.reciprocal %13 : vector<8x1xf32> -> vector<8x1xf32>
      %15 = vector.broadcast %14 : vector<8x1xf32> to vector<8x32xf32>
      %16 = arith.mulf %12, %15 : vector<8x32xf32>
      %c0_7 = arith.constant 0 : index
      %c0_8 = arith.constant 0 : index
      %17 = vector.load %arg8[%c0_7, %c0_8] : memref<32x32xf32, #tpu.memory_space<vmem>>, vector<32x32xf32>
      %cst = arith.constant dense<0.000000e+00> : vector<8x32xf32>
      %18 = tpu.matmul %16, %17, %cst {dimension_numbers = #tpu.dot_dimension_numbers<[1], [0], [0], [1], [0, 0, 1, 1], [], []>} : vector<8x32xf32>, vector<32x32xf32>, vector<8x32xf32> -> vector<8x32xf32>
      %c0_9 = arith.constant 0 : index
      %c0_10 = arith.constant 0 : index
      %c0_11 = arith.constant 0 : index
      %19 = vector.load %arg4[%c0_9, %c0_10, %c0_11] : memref<1x8x32xf32, #tpu.memory_space<vmem>>, vector<1x8x32xf32>
      %20 = vector.shape_cast %19 : vector<1x8x32xf32> to vector<8x32xf32>
      %21 = arith.addf %18, %20 : vector<8x32xf32>
      %22 = math.tanh %21 : vector<8x32xf32>
      %c0_12 = arith.constant 0 : index
      %c0_13 = arith.constant 0 : index
      %c0_14 = arith.constant 0 : index
      %23 = vector.load %arg9[%c0_12, %c0_13, %c0_14] : memref<1x8x32xf32, #tpu.memory_space<vmem>>, vector<1x8x32xf32>
      %24 = vector.shape_cast %23 : vector<1x8x32xf32> to vector<8x32xf32>
      %25 = vector.shape_cast %22 : vector<8x32xf32> to vector<1x8x32xf32>
      tpu.vector_store %arg9[%c0_12, %c0_13, %c0_14], %25 {strides = array<i32>} : memref<1x8x32xf32, #tpu.memory_space<vmem>>, vector<1x8x32xf32>,
    } else {
    }
    return
  }
  func.func @transform_0(%arg0: i32, %arg1: i32, %arg2: memref<2xi32, #tpu.memory_space<smem>>) -> (i32, i32, i32) {
    %c0_i32 = arith.constant 0 : i32
    %c0_i32_0 = arith.constant 0 : i32
    %c0_i32_1 = arith.constant 0 : i32
    return %arg0, %c0_i32, %c0_i32_0 : i32, i32, i32
  }
  func.func @transform_1(%arg0: i32, %arg1: i32, %arg2: memref<2xi32, #tpu.memory_space<smem>>) -> (i32, i32, i32) {
    %c0_i32 = arith.constant 0 : i32
    %c0_i32_0 = arith.constant 0 : i32
    %c0_i32_1 = arith.constant 0 : i32
    return %arg0, %c0_i32, %c0_i32_0 : i32, i32, i32
  }
  func.func @transform_2(%arg0: i32, %arg1: i32, %arg2: memref<2xi32, #tpu.memory_space<smem>>) -> (i32, i32, i32) {
    %0 = arith.index_cast %arg0 : i32 to index
    %1 = memref.load %arg2[%0] : memref<2xi32, #tpu.memory_space<smem>>
    %c15_i32 = arith.constant 15 : i32
    %2 = arith.addi %1, %c15_i32 : i32
    %c16_i32 = arith.constant 16 : i32
    %3 = arith.divsi %2, %c16_i32 : i32
    %c1_i32 = arith.constant 1 : i32
    %4 = arith.subi %3, %c1_i32 : i32
    %c0_i32 = arith.constant 0 : i32
    %5 = arith.maxsi %4, %c0_i32 : i32
    %6 = arith.minsi %arg1, %5 : i32
    %c0_i32_0 = arith.constant 0 : i32
    %c0_i32_1 = arith.constant 0 : i32
    return %arg0, %6, %c0_i32_0 : i32, i32, i32
  }
  func.func @transform_3(%arg0: i32, %arg1: i32, %arg2: memref<2xi32, #tpu.memory_space<smem>>) -> (i32, i32, i32) {
    %0 = arith.index_cast %arg0 : i32 to index
    %1 = memref.load %arg2[%0] : memref<2xi32, #tpu.memory_space<smem>>
    %c15_i32 = arith.constant 15 : i32
    %2 = arith.addi %1, %c15_i32 : i32
    %c16_i32 = arith.constant 16 : i32
    %3 = arith.divsi %2, %c16_i32 : i32
    %c1_i32 = arith.constant 1 : i32
    %4 = arith.subi %3, %c1_i32 : i32
    %c0_i32 = arith.constant 0 : i32
    %5 = arith.maxsi %4, %c0_i32 : i32
    %6 = arith.minsi %arg1, %5 : i32
    %c0_i32_0 = arith.constant 0 : i32
    %c0_i32_1 = arith.constant 0 : i32
    return %arg0, %6, %c0_i32_0 : i32, i32, i32
  }
  func.func @transform_4(%arg0: i32, %arg1: i32, %arg2: memref<2xi32, #tpu.memory_space<smem>>) -> (i32, i32) {
    %c0_i32 = arith.constant 0 : i32
    %c0_i32_0 = arith.constant 0 : i32
    %c0_i32_1 = arith.constant 0 : i32
    return %c0_i32, %c0_i32_0 : i32, i32
  }
  func.func @transform_5(%arg0: i32, %arg1: i32, %arg2: memref<2xi32, #tpu.memory_space<smem>>) -> (i32, i32) {
    %c0_i32 = arith.constant 0 : i32
    %c0_i32_0 = arith.constant 0 : i32
    %c0_i32_1 = arith.constant 0 : i32
    return %c0_i32, %c0_i32_0 : i32, i32
  }
  func.func @transform_6(%arg0: i32, %arg1: i32, %arg2: memref<2xi32, #tpu.memory_space<smem>>) -> (i32, i32, i32) {
    %c0_i32 = arith.constant 0 : i32
    %c0_i32_0 = arith.constant 0 : i32
    %c0_i32_1 = arith.constant 0 : i32
    return %arg0, %c0_i32, %c0_i32_0 : i32, i32, i32
  }
}

</mosaic_0001>

<llo_original>
// kernel: tpu_custom_call.1
$region0: #{tpu_custom_call.1}
  #allocation0 [shape = 'u32[]', space=smem, size = 0x4, offset = 0x4, fixed_abs, tag = 'smem constant byte address 0x4 - core index']
  #allocation1 [shape = 'u32[144,128]{1,0:T(1,128)}', space=vmem, size = 0x12000, scoped, tag = 'internal scratch']
  #allocation2 [shape = 'f32[8,1]{1,0:T(8,128)}', space=vmem, size = 0x1000, scoped, tag = 'scratch operand']
  #allocation3 [shape = 'f32[8,1]{1,0:T(8,128)}', space=vmem, size = 0x1000, scoped, tag = 'scratch operand']
  #allocation4 [shape = 'f32[8,32]{1,0:T(8,128)}', space=vmem, size = 0x1000, scoped, tag = 'scratch operand']
  #allocation5 [shape = 's32[1]{0}', space=sflag, size = 0x4, scoped, tag = 'scoped memory for tpu_custom_call.1']
  #allocation6 [shape = 'u8[512]{0}', space=smem, size = 0x200, scoped, tag = 'prefetched SMEM operand 0']
  %s0 = inlined_call_operand.hbm [shape: s32[2], index: 0, kind: input, shape index: {}]
  %s1 = inlined_call_operand.hbm [shape: f32[2,8,32], index: 1, kind: input, shape index: {}]
  %s2 = inlined_call_operand.hbm [shape: f32[2,8,32], index: 2, kind: input, shape index: {}]
  %s3 = inlined_call_operand.hbm [shape: f32[2,16,32], index: 3, kind: input, shape index: {}]
  %s4 = inlined_call_operand.hbm [shape: f32[2,16,32], index: 4, kind: input, shape index: {}]
  %s5 = inlined_call_operand.vmem [shape: f32[1,32], index: 5, kind: input, shape index: {}]
  %s6 = inlined_call_operand.hbm [shape: f32[32,32], index: 6, kind: input, shape index: {}]
  %s7 = inlined_call_operand.hbm [shape: f32[2,8,32], index: 7, kind: output, shape index: {}]
  %s8 = sld [smem:[#allocation0]]
  $region89: #{tpu_custom_call.1} parent=0
    _
  %s10 = ssub.s32 1, %s8
  %s11 = scalar_select 0, %s10, %s8
  %13 = dma.hbm_to_smem %s0, 16, [#allocation6], [#allocation5]
  %14 = dma.done [#allocation5], 16
  %15 = sfence
  $region1: #{tpu_custom_call.1} parent=0
    #allocation7 [shape = 'u8[8192]{0}', space=vmem, size = 0x2000, scoped, tag = 'input window, operand 1']
    #allocation8 [shape = 's32[2]{0}', space=sflag, size = 0x8, scoped, tag = 'scoped memory for tpu_custom_call.1']
    #allocation9 [shape = 's32[2]{0}', space=sflag, size = 0x8, scoped, tag = 'scoped memory for tpu_custom_call.1']
    #allocation10 [shape = 'u8[8192]{0}', space=vmem, size = 0x2000, scoped, tag = 'input window, operand 2']
    #allocation11 [shape = 's32[2]{0}', space=sflag, size = 0x8, scoped, tag = 'scoped memory for tpu_custom_call.1']
    #allocation12 [shape = 'u8[16384]{0}', space=vmem, size = 0x4000, scoped, tag = 'input window, operand 3']
    #allocation13 [shape = 'u8[16384]{0}', space=vmem, size = 0x4000, scoped, tag = 'input window, operand 4']
    #allocation14 [shape = 's32[2]{0}', space=sflag, size = 0x8, scoped, tag = 'scoped memory for tpu_custom_call.1']
    #allocation15 [shape = 'u8[16384]{0}', space=vmem, size = 0x4000, scoped, tag = 'input window, operand 6, single buffered']
    #allocation16 [shape = 'u8[8192]{0}', space=vmem, size = 0x2000, scoped, tag = 'output window, operand 0']
    %16 = vsyncpa [#allocation8], 0
    %s17 = scalar_lea.sflag [#allocation8], 1
    %18 = vsyncpa %s17, 0
    %19 = vsyncpa [#allocation11], 0
    %s20 = scalar_lea.sflag [#allocation11], 1
    %21 = vsyncpa %s20, 0
    %22 = vsyncpa [#allocation14], 0
    %s23 = scalar_lea.sflag [#allocation14], 1
    %24 = vsyncpa %s23, 0
    %25 = vsyncpa [#allocation9], 0
    %s26 = scalar_lea.sflag [#allocation9], 1
    %27 = vsyncpa %s26, 0
    loop: start=0, step=1, limit=4
    $region2: #{tpu_custom_call.1} parent=1 // loop_pre_header
      _
    $region3: #{tpu_custom_call.1} parent=1 // loop_header
      %s29 = sphi 0, %s33
      %p30 = scmp.ge.s32.totalorder %s29, 4
      %s36 = sphi 0, %s48
      %s37 = sphi 0, %s44
      %s38 = sphi 0, %s36
      %s39 = sphi 0, %s37
      %s40 = sphi 0, %s38
      %s41 = sphi 0, %s39
      %s51 = sphi 0, %s53
      %s54 = sphi 0, %s51
      %s55 = sphi 0, %s54
      %s71 = sphi 0, %s55
      %s77 = sphi 0, %s79
      %s80 = sphi 0, %s77
      %s81 = sphi 0, %s80
      %s97 = sphi 0, %s81
      %s131 = sphi 0, %s133
      %s134 = sphi 0, %s131
      %s135 = sphi 0, %s134
      %s151 = sphi 0, %s135
      %s185 = sphi 0, %s187
      %s188 = sphi 0, %s185
      %s189 = sphi 0, %s188
      %s205 = sphi 0, %s189
      %s209 = sphi 0, %s209
      %s211 = sphi 0, %s209
      %s212 = sphi 0, %s211
      %s226 = sphi 0, %s212
      %s230 = sphi 0, %s230
      %s232 = sphi 0, %s230
      %s233 = sphi 0, %s232
      %s247 = sphi 0, %s233
      %s253 = sphi 0, %s255
      %s256 = sphi 0, %s253
      %s257 = sphi 0, %s256
      %s273 = sphi 0, %s257
    $region4: #{tpu_custom_call.1} parent=1 // loop_header_branch
      %32 = sbr.rel (%p30) target = $region8
    $region5: #{tpu_custom_call.1} parent=1 // loop_body
      %s34 = ssub.s32 %s29, 1
      %s35 = ssub.s32 %s29, 2
      %s42 = sadd.s32 1, %s37
      %p43 = scmp.ge.s32.totalorder %s42, 1
      %s44 = scalar_select %p43, 0, %s42
      %s45 = sadd.s32 1, %s36
      %s46 = scalar_select %p43, %s45, %s36
      %p47 = scmp.ge.s32.totalorder %s46, 2
      %s48 = scalar_select %p47, 0, %s46
      %s49 = ssub.s32 %s36, %s48
      %p50 = scmp.eq.s32.totalorder %s49, 0
      %s52 = sadd.s32 %s51, 1
      %s53 = scalar_select %p50, %s51, %s52
      %p56 = pneg %p50
      %p57 = scmp.eq.s32.totalorder %s29, 1
      %p58 = por %p56, %p57
      %p59 = scmp.ne.s32.totalorder %s51, %s54
      %p60 = scmp.eq.s32.totalorder %s29, 0
      %p61 = por %p59, %p60
      %p62 = scmp.ne.s32.totalorder %s51, %s54
      %p63 = scmp.eq.s32.totalorder %s34, 1
      %p64 = por %p62, %p63
      %p65 = scmp.ne.s32.totalorder %s54, %s55
      %p66 = scmp.eq.s32.totalorder %s34, 0
      %p67 = por %p65, %p66
      %p68 = scmp.ne.s32.totalorder %s54, %s55
      %p69 = scmp.eq.s32.totalorder %s35, 1
      %p70 = por %p68, %p69
      %p72 = scmp.ne.s32.totalorder %s55, %s71
      %p73 = scmp.eq.s32.totalorder %s35, 0
      %p74 = por %p72, %p73
      %s75 = ssub.s32 %s36, %s48
      %p76 = scmp.eq.s32.totalorder %s75, 0
      %s78 = sadd.s32 %s77, 1
      %s79 = scalar_select %p76, %s77, %s78
      %p82 = pneg %p76
      %p83 = scmp.eq.s32.totalorder %s29, 1
      %p84 = por %p82, %p83
      %p85 = scmp.ne.s32.totalorder %s77, %s80
      %p86 = scmp.eq.s32.totalorder %s29, 0
      %p87 = por %p85, %p86
      %p88 = scmp.ne.s32.totalorder %s77, %s80
      %p89 = scmp.eq.s32.totalorder %s34, 1
      %p90 = por %p88, %p89
      %p91 = scmp.ne.s32.totalorder %s80, %s81
      %p92 = scmp.eq.s32.totalorder %s34, 0
      %p93 = por %p91, %p92
      %p94 = scmp.ne.s32.totalorder %s80, %s81
      %p95 = scmp.eq.s32.totalorder %s35, 1
      %p96 = por %p94, %p95
      %p98 = scmp.ne.s32.totalorder %s81, %s97
      %p99 = scmp.eq.s32.totalorder %s35, 0
      %p100 = por %p98, %p99
      %s101 = sld [smem:[#allocation6 + %s36]]
      %s102 = sadd.s32 %s101, 15
      %p103 = scmp.lt.s32.totalorder %s102, 0
      %s104 = ssub.s32 0, %s102
      %s105 = scalar_select %p103, %s104, %s102
      %s106 = sshrl.u32 %s105, 4
      %s107 = ssub.s32 0, %s106
      %s108 = scalar_select %p103, %s107, %s106
      %s109 = ssub.s32 %s108, 1
      %p110 = scmp.gt.s32.totalorder %s109, 0
      %s111 = scalar_select %p110, %s109, 0
      %p112 = scmp.lt.s32.totalorder %s37, %s111
      %s113 = scalar_select %p112, %s37, %s111
      %s114 = sld [smem:[#allocation6 + %s48]]
      %s115 = sadd.s32 %s114, 15
      %p116 = scmp.lt.s32.totalorder %s115, 0
      %s117 = ssub.s32 0, %s115
      %s118 = scalar_select %p116, %s117, %s115
      %s119 = sshrl.u32 %s118, 4
      %s120 = ssub.s32 0, %s119
      %s121 = scalar_select %p116, %s120, %s119
      %s122 = ssub.s32 %s121, 1
      %p123 = scmp.gt.s32.totalorder %s122, 0
      %s124 = scalar_select %p123, %s122, 0
      %p125 = scmp.lt.s32.totalorder %s44, %s124
      %s126 = scalar_select %p125, %s44, %s124
      %s127 = ssub.s32 %s36, %s48
      %s128 = ssub.s32 %s113, %s126
      %s129 = sor.u32 %s127, %s128
      %p130 = scmp.eq.s32.totalorder %s129, 0
      %s132 = sadd.s32 %s131, 1
      %s133 = scalar_select %p130, %s131, %s132
      %p136 = pneg %p130
      %p137 = scmp.eq.s32.totalorder %s29, 1
      %p138 = por %p136, %p137
      %p139 = scmp.ne.s32.totalorder %s131, %s134
      %p140 = scmp.eq.s32.totalorder %s29, 0
      %p141 = por %p139, %p140
      %p142 = scmp.ne.s32.totalorder %s131, %s134
      %p143 = scmp.eq.s32.totalorder %s34, 1
      %p144 = por %p142, %p143
      %p145 = scmp.ne.s32.totalorder %s134, %s135
      %p146 = scmp.eq.s32.totalorder %s34, 0
      %p147 = por %p145, %p146
      %p148 = scmp.ne.s32.totalorder %s134, %s135
      %p149 = scmp.eq.s32.totalorder %s35, 1
      %p150 = por %p148, %p149
      %p152 = scmp.ne.s32.totalorder %s135, %s151
      %p153 = scmp.eq.s32.totalorder %s35, 0
      %p154 = por %p152, %p153
      %s155 = sld [smem:[#allocation6 + %s36]]
      %s156 = sadd.s32 %s155, 15
      %p157 = scmp.lt.s32.totalorder %s156, 0
      %s158 = ssub.s32 0, %s156
      %s159 = scalar_select %p157, %s158, %s156
      %s160 = sshrl.u32 %s159, 4
      %s161 = ssub.s32 0, %s160
      %s162 = scalar_select %p157, %s161, %s160
      %s163 = ssub.s32 %s162, 1
      %p164 = scmp.gt.s32.totalorder %s163, 0
      %s165 = scalar_select %p164, %s163, 0
      %p166 = scmp.lt.s32.totalorder %s37, %s165
      %s167 = scalar_select %p166, %s37, %s165
      %s168 = sld [smem:[#allocation6 + %s48]]
      %s169 = sadd.s32 %s168, 15
      %p170 = scmp.lt.s32.totalorder %s169, 0
      %s171 = ssub.s32 0, %s169
      %s172 = scalar_select %p170, %s171, %s169
      %s173 = sshrl.u32 %s172, 4
      %s174 = ssub.s32 0, %s173
      %s175 = scalar_select %p170, %s174, %s173
      %s176 = ssub.s32 %s175, 1
      %p177 = scmp.gt.s32.totalorder %s176, 0
      %s178 = scalar_select %p177, %s176, 0
      %p179 = scmp.lt.s32.totalorder %s44, %s178
      %s180 = scalar_select %p179, %s44, %s178
      %s181 = ssub.s32 %s36, %s48
      %s182 = ssub.s32 %s167, %s180
      %s183 = sor.u32 %s181, %s182
      %p184 = scmp.eq.s32.totalorder %s183, 0
      %s186 = sadd.s32 %s185, 1
      %s187 = scalar_select %p184, %s185, %s186
      %p190 = pneg %p184
      %p191 = scmp.eq.s32.totalorder %s29, 1
      %p192 = por %p190, %p191
      %p193 = scmp.ne.s32.totalorder %s185, %s188
      %p194 = scmp.eq.s32.totalorder %s29, 0
      %p195 = por %p193, %p194
      %p196 = scmp.ne.s32.totalorder %s185, %s188
      %p197 = scmp.eq.s32.totalorder %s34, 1
      %p198 = por %p196, %p197
      %p199 = scmp.ne.s32.totalorder %s188, %s189
      %p200 = scmp.eq.s32.totalorder %s34, 0
      %p201 = por %p199, %p200
      %p202 = scmp.ne.s32.totalorder %s188, %s189
      %p203 = scmp.eq.s32.totalorder %s35, 1
      %p204 = por %p202, %p203
      %p206 = scmp.ne.s32.totalorder %s189, %s205
      %p207 = scmp.eq.s32.totalorder %s35, 0
      %p208 = por %p206, %p207
      %s210 = sadd.s32 %s209, 1
      %p213 = scmp.eq.s32.totalorder %s29, 1
      %p214 = scmp.ne.s32.totalorder %s209, %s211
      %p215 = scmp.eq.s32.totalorder %s29, 0
      %p216 = por %p214, %p215
      %p217 = scmp.ne.s32.totalorder %s209, %s211
      %p218 = scmp.eq.s32.totalorder %s34, 1
      %p219 = por %p217, %p218
      %p220 = scmp.ne.s32.totalorder %s211, %s212
      %p221 = scmp.eq.s32.totalorder %s34, 0
      %p222 = por %p220, %p221
      %p223 = scmp.ne.s32.totalorder %s211, %s212
      %p224 = scmp.eq.s32.totalorder %s35, 1
      %p225 = por %p223, %p224
      %p227 = scmp.ne.s32.totalorder %s212, %s226
      %p228 = scmp.eq.s32.totalorder %s35, 0
      %p229 = por %p227, %p228
      %s231 = sadd.s32 %s230, 1
      %p234 = scmp.eq.s32.totalorder %s29, 1
      %p235 = scmp.ne.s32.totalorder %s230, %s232
      %p236 = scmp.eq.s32.totalorder %s29, 0
      %p237 = por %p235, %p236
      %p238 = scmp.ne.s32.totalorder %s230, %s232
      %p239 = scmp.eq.s32.totalorder %s34, 1
      %p240 = por %p238, %p239
      %p241 = scmp.ne.s32.totalorder %s232, %s233
      %p242 = scmp.eq.s32.totalorder %s34, 0
      %p243 = por %p241, %p242
      %p244 = scmp.ne.s32.totalorder %s232, %s233
      %p245 = scmp.eq.s32.totalorder %s35, 1
      %p246 = por %p244, %p245
      %p248 = scmp.ne.s32.totalorder %s233, %s247
      %p249 = scmp.eq.s32.totalorder %s35, 0
      %p250 = por %p248, %p249
      %s251 = ssub.s32 %s36, %s48
      %p252 = scmp.eq.s32.totalorder %s251, 0
      %s254 = sadd.s32 %s253, 1
      %s255 = scalar_select %p252, %s253, %s254
      %p258 = pneg %p252
      %p259 = scmp.eq.s32.totalorder %s29, 1
      %p260 = por %p258, %p259
      %p261 = scmp.ne.s32.totalorder %s253, %s256
      %p262 = scmp.eq.s32.totalorder %s29, 0
      %p263 = por %p261, %p262
      %p264 = scmp.ne.s32.totalorder %s253, %s256
      %p265 = scmp.eq.s32.totalorder %s34, 1
      %p266 = por %p264, %p265
      %p267 = scmp.ne.s32.totalorder %s256, %s257
      %p268 = scmp.eq.s32.totalorder %s34, 0
      %p269 = por %p267, %p268
      %p270 = scmp.ne.s32.totalorder %s256, %s257
      %p271 = scmp.eq.s32.totalorder %s35, 1
      %p272 = por %p270, %p271
      %p274 = scmp.ne.s32.totalorder %s257, %s273
      %p275 = scmp.eq.s32.totalorder %s35, 0
      %p276 = por %p274, %p275
      %p277 = scmp.le.s32.totalorder 1, %s29
      %p278 = scmp.lt.s32.totalorder %s29, 3
      %p279 = pnand %p277, %p278
      %p280 = pneg %p279
      // Predicated region
      $region9: #{tpu_custom_call.1} parent=5 // pred_check
        _
      $region10: #{tpu_custom_call.1} parent=5 // pred_check_branch
        %282 = sbr.rel (%p279) target = $region12
      $region11: #{tpu_custom_call.1} parent=5 // pred_region
        %s283 = ssub.s32 %s29, 1
        // Predicated region
        $region13: #{tpu_custom_call.1} parent=11 // pred_check
          %p284 = pneg %p222
        $region14: #{tpu_custom_call.1} parent=11 // pred_check_branch
          %286 = sbr.rel (%p284) target = $region16
        $region15: #{tpu_custom_call.1} parent=11 // pred_region
          _
        $region16: #{tpu_custom_call.1} parent=11 // pred_fallthru
          _
        // Predicated region
        $region17: #{tpu_custom_call.1} parent=11 // pred_check
          %p287 = pneg %p243
        $region18: #{tpu_custom_call.1} parent=11 // pred_check_branch
          %289 = sbr.rel (%p287) target = $region20
        $region19: #{tpu_custom_call.1} parent=11 // pred_region
          %s291 = ssub.s32 512, 512
          %292 = vsyncadd [#allocation14], %s291
          %s293 = sshll.u32 [#allocation15], 4
          %s294 = int_to_ptr.vmem [resolvable:$true] %s293
          %299 = dma.hbm_to_vmem [thread:$0]  %s6, 512, %s294, [#allocation14], 128, 128, 8
        $region20: #{tpu_custom_call.1} parent=11 // pred_fallthru
          _
      $region12: #{tpu_custom_call.1} parent=5 // pred_fallthru
        _
      %p300 = scmp.lt.s32.totalorder %s29, 2
      // Predicated region
      $region21: #{tpu_custom_call.1} parent=5 // pred_check
        %p301 = pneg %p300
      $region22: #{tpu_custom_call.1} parent=5 // pred_check_branch
        %303 = sbr.rel (%p301) target = $region24
      $region23: #{tpu_custom_call.1} parent=5 // pred_region
        // Predicated region
        $region25: #{tpu_custom_call.1} parent=23 // pred_check
          %p304 = pneg %p61
        $region26: #{tpu_custom_call.1} parent=23 // pred_check_branch
          %306 = sbr.rel (%p304) target = $region28
        $region27: #{tpu_custom_call.1} parent=23 // pred_region
          %s307 = sand.u32 %s51, 1
          %s308 = scalar_lea.sflag [#allocation8], %s307
          %s309 = sand.u32 %s51, 1
          %s310 = smul.addr %s309, 8
          %s311 = scalar_lea.vmem [#allocation7], %s310
          %s313 = ssub.s32 128, 128
          %314 = vsyncadd %s308, %s313
          %s315 = smul.addr %s36, 128
          %s316 = scalar_lea.hbm %s1, %s315
          %s318 = sshll.u32 %s311, 4
          %s319 = int_to_ptr.vmem [resolvable:$true] %s318
          %321 = dma.hbm_to_vmem [thread:$0]  %s316, 128, %s319, %s308
        $region28: #{tpu_custom_call.1} parent=23 // pred_fallthru
          _
        // Predicated region
        $region29: #{tpu_custom_call.1} parent=23 // pred_check
          %p322 = pneg %p87
        $region30: #{tpu_custom_call.1} parent=23 // pred_check_branch
          %324 = sbr.rel (%p322) target = $region32
        $region31: #{tpu_custom_call.1} parent=23 // pred_region
          %s325 = sand.u32 %s29, 1
          %s326 = scalar_lea.sflag [#allocation11], %s325
          %s327 = sand.u32 %s77, 1
          %s328 = smul.addr %s327, 8
          %s329 = scalar_lea.vmem [#allocation10], %s328
          %s331 = ssub.s32 128, 128
          %332 = vsyncadd %s326, %s331
          %s333 = smul.addr %s36, 128
          %s334 = scalar_lea.hbm %s2, %s333
          %s336 = sshll.u32 %s329, 4
          %s337 = int_to_ptr.vmem [resolvable:$true] %s336
          %339 = dma.hbm_to_vmem [thread:$0]  %s334, 128, %s337, %s326
        $region32: #{tpu_custom_call.1} parent=23 // pred_fallthru
          _
        // Predicated region
        $region33: #{tpu_custom_call.1} parent=23 // pred_check
          %p340 = pneg %p141
        $region34: #{tpu_custom_call.1} parent=23 // pred_check_branch
          %342 = sbr.rel (%p340) target = $region36
        $region35: #{tpu_custom_call.1} parent=23 // pred_region
          %s343 = sand.u32 %s29, 1
          %s344 = scalar_lea.sflag [#allocation11], %s343
          %s345 = sand.u32 %s131, 1
          %s346 = smul.addr %s345, 16
          %s347 = scalar_lea.vmem [#allocation12], %s346
          %s348 = sld [smem:[#allocation6 + %s36]]
          %s349 = sadd.s32 %s348, 15
          %p350 = scmp.lt.s32.totalorder %s349, 0
          %s351 = ssub.s32 0, %s349
          %s352 = scalar_select %p350, %s351, %s349
          %s353 = sshrl.u32 %s352, 4
          %s354 = ssub.s32 0, %s353
          %s355 = scalar_select %p350, %s354, %s353
          %s356 = ssub.s32 %s355, 1
          %p357 = scmp.gt.s32.totalorder %s356, 0
          %s358 = scalar_select %p357, %s356, 0
          %p359 = scmp.lt.s32.totalorder %s37, %s358
          %s360 = scalar_select %p359, %s37, %s358
          %s361 = smul.u32 2, %s360
          %s363 = ssub.s32 256, 256
          %364 = vsyncadd %s344, %s363
          %s365 = smul.addr %s36, 2
          %s366 = sadd.s32 %s361, %s365
          %s367 = smul.addr %s366, 128
          %s368 = scalar_lea.hbm %s3, %s367
          %s369 = sshll.u32 %s347, 4
          %s370 = int_to_ptr.vmem [resolvable:$true] %s369
          %375 = dma.hbm_to_vmem [thread:$0]  %s368, 256, %s370, %s344, 128, 128, 8
        $region36: #{tpu_custom_call.1} parent=23 // pred_fallthru
          _
        // Predicated region
        $region37: #{tpu_custom_call.1} parent=23 // pred_check
          %p376 = pneg %p195
        $region38: #{tpu_custom_call.1} parent=23 // pred_check_branch
          %378 = sbr.rel (%p376) target = $region40
        $region39: #{tpu_custom_call.1} parent=23 // pred_region
          %s379 = sand.u32 %s29, 1
          %s380 = scalar_lea.sflag [#allocation14], %s379
          %s381 = sand.u32 %s185, 1
          %s382 = smul.addr %s381, 16
          %s383 = scalar_lea.vmem [#allocation13], %s382
          %s384 = sld [smem:[#allocation6 + %s36]]
          %s385 = sadd.s32 %s384, 15
          %p386 = scmp.lt.s32.totalorder %s385, 0
          %s387 = ssub.s32 0, %s385
          %s388 = scalar_select %p386, %s387, %s385
          %s389 = sshrl.u32 %s388, 4
          %s390 = ssub.s32 0, %s389
          %s391 = scalar_select %p386, %s390, %s389
          %s392 = ssub.s32 %s391, 1
          %p393 = scmp.gt.s32.totalorder %s392, 0
          %s394 = scalar_select %p393, %s392, 0
          %p395 = scmp.lt.s32.totalorder %s37, %s394
          %s396 = scalar_select %p395, %s37, %s394
          %s397 = smul.u32 2, %s396
          %s399 = ssub.s32 256, 256
          %400 = vsyncadd %s380, %s399
          %s401 = smul.addr %s36, 2
          %s402 = sadd.s32 %s397, %s401
          %s403 = smul.addr %s402, 128
          %s404 = scalar_lea.hbm %s4, %s403
          %s405 = sshll.u32 %s383, 4
          %s406 = int_to_ptr.vmem [resolvable:$true] %s405
          %411 = dma.hbm_to_vmem [thread:$0]  %s404, 256, %s406, %s380, 128, 128, 8
        $region40: #{tpu_custom_call.1} parent=23 // pred_fallthru
          _
      $region24: #{tpu_custom_call.1} parent=5 // pred_fallthru
        _
      %p412 = scmp.le.s32.totalorder 1, %s29
      %p413 = scmp.lt.s32.totalorder %s29, 3
      %p414 = pnand %p412, %p413
      %p415 = pneg %p414
      // Predicated region
      $region41: #{tpu_custom_call.1} parent=5 // pred_check
        _
      $region42: #{tpu_custom_call.1} parent=5 // pred_check_branch
        %417 = sbr.rel (%p414) target = $region44
      $region43: #{tpu_custom_call.1} parent=5 // pred_region
        %s418 = ssub.s32 %s29, 1
        %s419 = sand.u32 %s54, 1
        %s420 = scalar_lea.sflag [#allocation8], %s419
        %s421 = sand.u32 %s54, 1
        %s422 = smul.addr %s421, 8
        %s423 = scalar_lea.vmem [#allocation7], %s422
        // Predicated region
        $region45: #{tpu_custom_call.1} parent=43 // pred_check
          %p424 = pneg %p67
        $region46: #{tpu_custom_call.1} parent=43 // pred_check_branch
          %426 = sbr.rel (%p424) target = $region48
        $region47: #{tpu_custom_call.1} parent=43 // pred_region
          %427 = dma.done %s420, 128
        $region48: #{tpu_custom_call.1} parent=43 // pred_fallthru
          _
        %s428 = sand.u32 %s34, 1
        %s429 = scalar_lea.sflag [#allocation11], %s428
        %s430 = sand.u32 %s80, 1
        %s431 = smul.addr %s430, 8
        %s432 = scalar_lea.vmem [#allocation10], %s431
        // Predicated region
        $region49: #{tpu_custom_call.1} parent=43 // pred_check
          %p433 = pneg %p93
        $region50: #{tpu_custom_call.1} parent=43 // pred_check_branch
          %435 = sbr.rel (%p433) target = $region52
        $region51: #{tpu_custom_call.1} parent=43 // pred_region
          %436 = dma.done %s429, 128
        $region52: #{tpu_custom_call.1} parent=43 // pred_fallthru
          _
        %s437 = sand.u32 %s34, 1
        %s438 = scalar_lea.sflag [#allocation11], %s437
        %s439 = sand.u32 %s134, 1
        %s440 = smul.addr %s439, 16
        %s441 = scalar_lea.vmem [#allocation12], %s440
        // Predicated region
        $region53: #{tpu_custom_call.1} parent=43 // pred_check
          %p442 = pneg %p147
        $region54: #{tpu_custom_call.1} parent=43 // pred_check_branch
          %444 = sbr.rel (%p442) target = $region56
        $region55: #{tpu_custom_call.1} parent=43 // pred_region
          %445 = dma.done %s438, 256
        $region56: #{tpu_custom_call.1} parent=43 // pred_fallthru
          _
        %s446 = sand.u32 %s34, 1
        %s447 = scalar_lea.sflag [#allocation14], %s446
        %s448 = sand.u32 %s188, 1
        %s449 = smul.addr %s448, 16
        %s450 = scalar_lea.vmem [#allocation13], %s449
        // Predicated region
        $region57: #{tpu_custom_call.1} parent=43 // pred_check
          %p451 = pneg %p201
        $region58: #{tpu_custom_call.1} parent=43 // pred_check_branch
          %453 = sbr.rel (%p451) target = $region60
        $region59: #{tpu_custom_call.1} parent=43 // pred_region
          %454 = dma.done %s447, 256
        $region60: #{tpu_custom_call.1} parent=43 // pred_fallthru
          _
        // Predicated region
        $region61: #{tpu_custom_call.1} parent=43 // pred_check
          %p455 = pneg %p243
        $region62: #{tpu_custom_call.1} parent=43 // pred_check_branch
          %457 = sbr.rel (%p455) target = $region64
        $region63: #{tpu_custom_call.1} parent=43 // pred_region
          %458 = dma.done [#allocation14], 512
        $region64: #{tpu_custom_call.1} parent=43 // pred_fallthru
          _
        %s459 = sand.u32 %s54, 1
        %s460 = scalar_lea.sflag [#allocation8], %s459
        %s461 = sand.u32 %s54, 1
        %s462 = smul.addr %s461, 8
        %s463 = scalar_lea.vmem [#allocation7], %s462
        %p464 = pneg %p67
        %p465 = pneg %p64
        %s466 = sand.u32 %s34, 1
        %s467 = scalar_lea.sflag [#allocation11], %s466
        %s468 = sand.u32 %s80, 1
        %s469 = smul.addr %s468, 8
        %s470 = scalar_lea.vmem [#allocation10], %s469
        %p471 = pneg %p93
        %p472 = pneg %p90
        %s473 = sand.u32 %s34, 1
        %s474 = scalar_lea.sflag [#allocation11], %s473
        %s475 = sand.u32 %s134, 1
        %s476 = smul.addr %s475, 16
        %s477 = scalar_lea.vmem [#allocation12], %s476
        %p478 = pneg %p147
        %p479 = pneg %p144
        %s480 = sand.u32 %s34, 1
        %s481 = scalar_lea.sflag [#allocation14], %s480
        %s482 = sand.u32 %s188, 1
        %s483 = smul.addr %s482, 16
        %s484 = scalar_lea.vmem [#allocation13], %s483
        %p485 = pneg %p201
        %p486 = pneg %p198
        %p487 = pneg %p222
        %p488 = pneg %p219
        %p489 = pneg %p243
        %p490 = pneg %p240
        %p491 = pneg %p269
        %p492 = pneg %p266
        %s493 = sand.u32 %s256, 1
        %s494 = scalar_lea.sflag [#allocation9], %s493
        %s495 = sand.u32 %s256, 1
        %s496 = smul.addr %s495, 8
        %s497 = scalar_lea.vmem [#allocation16], %s496
        %s498 = sld [smem:[#allocation6 + %s38]]
        %s499 = sadd.s32 %s498, 15
        %p500 = scmp.lt.s32.totalorder %s499, 0
        %s501 = ssub.s32 0, %s499
        %s502 = scalar_select %p500, %s501, %s499
        %s503 = sshrl.u32 %s502, 4
        %s504 = ssub.s32 0, %s503
        %s505 = scalar_select %p500, %s504, %s503
        %s506 = ssub.s32 %s505, 1
        %p507 = scmp.gt.s32.totalorder %s506, 0
        %s508 = scalar_select %p507, %s506, 0
        %p509 = scmp.lt.s32.totalorder %s39, %s508
        %s510 = scalar_select %p509, %s39, %s508
        %s511 = smul.u32 2, %s510
        %s512 = sld [smem:[#allocation6 + %s38]]
        %s513 = sadd.s32 %s512, 15
        %p514 = scmp.lt.s32.totalorder %s513, 0
        %s515 = ssub.s32 0, %s513
        %s516 = scalar_select %p514, %s515, %s513
        %s517 = sshrl.u32 %s516, 4
        %s518 = ssub.s32 0, %s517
        %s519 = scalar_select %p514, %s518, %s517
        %s520 = ssub.s32 %s519, 1
        %p521 = scmp.gt.s32.totalorder %s520, 0
        %s522 = scalar_select %p521, %s520, 0
        %p523 = scmp.lt.s32.totalorder %s39, %s522
        %s524 = scalar_select %p523, %s39, %s522
        %s525 = smul.u32 2, %s524
        %p526 = scmp.eq.s32.totalorder %s39, 0
        // Predicated region
        $region65: #{tpu_custom_call.1} parent=43 // pred_check
          %p527 = pneg %p526
        $region66: #{tpu_custom_call.1} parent=43 // pred_check_branch
          %529 = sbr.rel (%p527) target = $region68
        $region67: #{tpu_custom_call.1} parent=43 // pred_region
          %vm530 = vcmask 7168
          %531 = vst.msk [vmem:[#allocation2] sm:$0xff] %vm530, -1e+30
          %532 = vst.msk [vmem:[#allocation3] sm:$0xff] %vm530, 0.0
          %vm533 = vcmask 261120
          %534 = vst.msk [vmem:[#allocation4] sm:$0xff] %vm533, 0.0
        $region68: #{tpu_custom_call.1} parent=43 // pred_fallthru
          _
        %s535 = sld [smem:[#allocation6 + %s38]]
        %s536 = smul.u32 %s39, 16
        %p537 = scmp.lt.s32.totalorder %s536, %s535
        // Predicated region
        $region69: #{tpu_custom_call.1} parent=43 // pred_check
          %p538 = pneg %p537
        $region70: #{tpu_custom_call.1} parent=43 // pred_check_branch
          %540 = sbr.rel (%p538) target = $region72
        $region71: #{tpu_custom_call.1} parent=43 // pred_region
          %v541 = vld [vmem:[%s423] sm:$0xff]
          %v542 = vld [vmem:[%s441] sm:$0xff]
          %v543 = vld [vmem:[%s441 + $0x8] sm:$0xff]
          %v544 = vld [vmem:[%s450] sm:$0xff]
          %v545 = vld [vmem:[%s450 + $0x8] sm:$0xff]
          %v547 = vcombine.high %v541, %v541
          %v549 = vunpack.c.l.s4 1966171168
          %v550 = vunpack.c.0.s8 %v549
          %v551 = vlaneseq
          %v552 = vshrl.u32 %v551, 7
          %v553 = vsub.s32 %v550, %v552
          %v554 = vrot.slane %v541, %v553
          %v556 = vunpack.c.l.s4 1966171168
          %v557 = vunpack.c.0.s8 %v556
          %v558 = vlaneseq
          %v559 = vshrl.u32 %v558, 7
          %v560 = vsub.s32 %v557, %v559
          %v561 = vrot.slane %v547, %v560
          %v562 = vcombine.high %v554, %v554
          %v563 = vcombine.high %v561, %v561
          %v565 = vunpack.c.l.s4 1966171168
          %v566 = vunpack.c.0.s8 %v565
          %v567 = vlaneseq
          %v568 = vshrl.u32 %v567, 7
          %v569 = vsub.s32 %v566, %v568
          %v570 = vrot.slane %v554, %v569
          %v572 = vunpack.c.l.s4 1966171168
          %v573 = vunpack.c.0.s8 %v572
          %v574 = vlaneseq
          %v575 = vshrl.u32 %v574, 7
          %v576 = vsub.s32 %v573, %v575
          %v577 = vrot.slane %v561, %v576
          %v579 = vunpack.c.l.s4 1966171168
          %v580 = vunpack.c.0.s8 %v579
          %v581 = vlaneseq
          %v582 = vshrl.u32 %v581, 7
          %v583 = vsub.s32 %v580, %v582
          %v584 = vrot.slane %v562, %v583
          %v586 = vunpack.c.l.s4 1966171168
          %v587 = vunpack.c.0.s8 %v586
          %v588 = vlaneseq
          %v589 = vshrl.u32 %v588, 7
          %v590 = vsub.s32 %v587, %v589
          %v591 = vrot.slane %v563, %v590
          %v592 = vcombine.high %v570, %v570
          %v593 = vcombine.high %v577, %v577
          %v594 = vcombine.high %v584, %v584
          %v595 = vcombine.high %v591, %v591
          %v596 = vlaneseq
          %v597 = vshrl.u32 %v596, 7
          %v598 = vsub.s32 0, %v597
          %v599 = vrot.slane %v570, %v598
          %v600 = vlaneseq
          %v601 = vshrl.u32 %v600, 7
          %v602 = vsub.s32 0, %v601
          %v603 = vrot.slane %v584, %v602
          %v604 = vlaneseq
          %v605 = vshrl.u32 %v604, 7
          %v606 = vsub.s32 0, %v605
          %v607 = vrot.slane %v592, %v606
          %v608 = vlaneseq
          %v609 = vshrl.u32 %v608, 7
          %v610 = vsub.s32 0, %v609
          %v611 = vrot.slane %v594, %v610
          %v612 = vlaneseq
          %v613 = vshrl.u32 %v612, 7
          %v614 = vsub.s32 0, %v613
          %v615 = vrot.slane %v577, %v614
          %v616 = vlaneseq
          %v617 = vshrl.u32 %v616, 7
          %v618 = vsub.s32 0, %v617
          %v619 = vrot.slane %v591, %v618
          %v620 = vlaneseq
          %v621 = vshrl.u32 %v620, 7
          %v622 = vsub.s32 0, %v621
          %v623 = vrot.slane %v593, %v622
          %v624 = vlaneseq
          %v625 = vshrl.u32 %v624, 7
          %v626 = vsub.s32 0, %v625
          %v627 = vrot.slane %v595, %v626
          %v636 = vadd.f32 %v599, %v542
          %v637 = vadd.f32 %v599, %v543
          %v638 = vadd.f32 %v603, %v542
          %v639 = vadd.f32 %v603, %v543
          %v640 = vadd.f32 %v607, %v542
          %v641 = vadd.f32 %v607, %v543
          %v642 = vadd.f32 %v611, %v542
          %v643 = vadd.f32 %v611, %v543
          %v644 = vadd.f32 %v615, %v542
          %v645 = vadd.f32 %v615, %v543
          %v646 = vadd.f32 %v619, %v542
          %v647 = vadd.f32 %v619, %v543
          %v648 = vadd.f32 %v623, %v542
          %v649 = vadd.f32 %v623, %v543
          %v650 = vadd.f32 %v627, %v542
          %v651 = vadd.f32 %v627, %v543
          %v652 = vtanh.pop %v636
          %v653 = vtanh.pop %v637
          %v654 = vtanh.pop %v638
          %v655 = vtanh.pop %v639
          %v656 = vtanh.pop %v640
          %v657 = vtanh.pop %v641
          %v658 = vtanh.pop %v642
          %v659 = vtanh.pop %v643
          %v660 = vtanh.pop %v644
          %v661 = vtanh.pop %v645
          %v662 = vtanh.pop %v646
          %v663 = vtanh.pop %v647
          %v664 = vtanh.pop %v648
          %v665 = vtanh.pop %v649
          %v666 = vtanh.pop %v650
          %v667 = vtanh.pop %v651
          %v668 = vld [vmem:[%s5] sm:$0x1]
          %v670 = vlaneseq
          %v671 = vshrl.u32 %v670, 7
          %v672 = vsub.s32 0, %v671
          %v673 = vrot.slane %v668, %v672
          %v675 = vmul.f32 %v652, %v673
          %v676 = vmul.f32 %v653, %v673
          %v677 = vmul.f32 %v654, %v673
          %v678 = vmul.f32 %v655, %v673
          %v679 = vmul.f32 %v656, %v673
          %v680 = vmul.f32 %v657, %v673
          %v681 = vmul.f32 %v658, %v673
          %v682 = vmul.f32 %v659, %v673
          %v683 = vmul.f32 %v660, %v673
          %v684 = vmul.f32 %v661, %v673
          %v685 = vmul.f32 %v662, %v673
          %v686 = vmul.f32 %v663, %v673
          %v687 = vmul.f32 %v664, %v673
          %v688 = vmul.f32 %v665, %v673
          %v689 = vmul.f32 %v666, %v673
          %v690 = vmul.f32 %v667, %v673
          %vm691 = vcmask 261120
          %v692 = vsel %vm691, %v675, 0.0
          %693 = vadd.xlane.f32.xlu0 %v692
          %v694 = vpop.xlane.xlu0 %693
          %v695 = vsel %vm691, %v676, 0.0
          %696 = vadd.xlane.f32.xlu0 %v695
          %v697 = vpop.xlane.xlu0 %696
          %v698 = vsel %vm691, %v677, 0.0
          %699 = vadd.xlane.f32.xlu0 %v698
          %v700 = vpop.xlane.xlu0 %699
          %v701 = vsel %vm691, %v678, 0.0
          %702 = vadd.xlane.f32.xlu0 %v701
          %v703 = vpop.xlane.xlu0 %702
          %v704 = vsel %vm691, %v679, 0.0
          %705 = vadd.xlane.f32.xlu0 %v704
          %v706 = vpop.xlane.xlu0 %705
          %v707 = vsel %vm691, %v680, 0.0
          %708 = vadd.xlane.f32.xlu0 %v707
          %v709 = vpop.xlane.xlu0 %708
          %v710 = vsel %vm691, %v681, 0.0
          %711 = vadd.xlane.f32.xlu0 %v710
          %v712 = vpop.xlane.xlu0 %711
          %v713 = vsel %vm691, %v682, 0.0
          %714 = vadd.xlane.f32.xlu0 %v713
          %v715 = vpop.xlane.xlu0 %714
          %v716 = vsel %vm691, %v683, 0.0
          %717 = vadd.xlane.f32.xlu0 %v716
          %v718 = vpop.xlane.xlu0 %717
          %v719 = vsel %vm691, %v684, 0.0
          %720 = vadd.xlane.f32.xlu0 %v719
          %v721 = vpop.xlane.xlu0 %720
          %v722 = vsel %vm691, %v685, 0.0
          %723 = vadd.xlane.f32.xlu0 %v722
          %v724 = vpop.xlane.xlu0 %723
          %v725 = vsel %vm691, %v686, 0.0
          %726 = vadd.xlane.f32.xlu0 %v725
          %v727 = vpop.xlane.xlu0 %726
          %v728 = vsel %vm691, %v687, 0.0
          %729 = vadd.xlane.f32.xlu0 %v728
          %v730 = vpop.xlane.xlu0 %729
          %v731 = vsel %vm691, %v688, 0.0
          %732 = vadd.xlane.f32.xlu0 %v731
          %v733 = vpop.xlane.xlu0 %732
          %v734 = vsel %vm691, %v689, 0.0
          %735 = vadd.xlane.f32.xlu0 %v734
          %v736 = vpop.xlane.xlu0 %735
          %v737 = vsel %vm691, %v690, 0.0
          %738 = vadd.xlane.f32.xlu0 %v737
          %v739 = vpop.xlane.xlu0 %738
          %v740 = vlaneseq
          %v741 = vand.u32 %v740, 127
          %v742 = vstv %s536
          %v743 = vadd.s32 %v741, %v742
          %v744 = vstv %s535
          %vm745 = vcmp.lt.s32.totalorder %v743, %v744
          %v762 = vlaneseq
          %v763 = vshrl.u32 %v762, 7
          %v764 = vsub.s32 %v741, %v763
          %v765 = vrot.slane %v694, %v764
          %v766 = vadd.s32 %v741, 4294967288
          %v767 = vlaneseq
          %v768 = vshrl.u32 %v767, 7
          %v769 = vsub.s32 %v766, %v768
          %v770 = vrot.slane %v697, %v769
          %vm771 = vcmask 130112
          %v772 = vsel %vm771, %v770, %v765
          %v773 = vlaneseq
          %v774 = vshrl.u32 %v773, 7
          %v775 = vsub.s32 %v741, %v774
          %v776 = vrot.slane %v700, %v775
          %v777 = vlaneseq
          %v778 = vshrl.u32 %v777, 7
          %v779 = vsub.s32 %v766, %v778
          %v780 = vrot.slane %v703, %v779
          %v781 = vsel %vm771, %v780, %v776
          %v782 = vlaneseq
          %v783 = vshrl.u32 %v782, 7
          %v784 = vsub.s32 %v741, %v783
          %v785 = vrot.slane %v706, %v784
          %v786 = vlaneseq
          %v787 = vshrl.u32 %v786, 7
          %v788 = vsub.s32 %v766, %v787
          %v789 = vrot.slane %v709, %v788
          %v790 = vsel %vm771, %v789, %v785
          %v791 = vlaneseq
          %v792 = vshrl.u32 %v791, 7
          %v793 = vsub.s32 %v741, %v792
          %v794 = vrot.slane %v712, %v793
          %v795 = vlaneseq
          %v796 = vshrl.u32 %v795, 7
          %v797 = vsub.s32 %v766, %v796
          %v798 = vrot.slane %v715, %v797
          %v799 = vsel %vm771, %v798, %v794
          %v800 = vlaneseq
          %v801 = vshrl.u32 %v800, 7
          %v802 = vsub.s32 %v741, %v801
          %v803 = vrot.slane %v718, %v802
          %v804 = vlaneseq
          %v805 = vshrl.u32 %v804, 7
          %v806 = vsub.s32 %v766, %v805
          %v807 = vrot.slane %v721, %v806
          %v808 = vsel %vm771, %v807, %v803
          %v809 = vlaneseq
          %v810 = vshrl.u32 %v809, 7
          %v811 = vsub.s32 %v741, %v810
          %v812 = vrot.slane %v724, %v811
          %v813 = vlaneseq
          %v814 = vshrl.u32 %v813, 7
          %v815 = vsub.s32 %v766, %v814
          %v816 = vrot.slane %v727, %v815
          %v817 = vsel %vm771, %v816, %v812
          %v818 = vlaneseq
          %v819 = vshrl.u32 %v818, 7
          %v820 = vsub.s32 %v741, %v819
          %v821 = vrot.slane %v730, %v820
          %v822 = vlaneseq
          %v823 = vshrl.u32 %v822, 7
          %v824 = vsub.s32 %v766, %v823
          %v825 = vrot.slane %v733, %v824
          %v826 = vsel %vm771, %v825, %v821
          %v827 = vlaneseq
          %v828 = vshrl.u32 %v827, 7
          %v829 = vsub.s32 %v741, %v828
          %v830 = vrot.slane %v736, %v829
          %v831 = vlaneseq
          %v832 = vshrl.u32 %v831, 7
          %v833 = vsub.s32 %v766, %v832
          %v834 = vrot.slane %v739, %v833
          %v835 = vsel %vm771, %v834, %v830
          %vm836 = vcmask 1041409
          %v837 = vsel %vm836, %v781, %v772
          %vm838 = vcmask 1042434
          %v839 = vsel %vm838, %v790, %v837
          %vm840 = vcmask 1043459
          %v841 = vsel %vm840, %v799, %v839
          %vm842 = vcmask 1044484
          %v843 = vsel %vm842, %v808, %v841
          %vm844 = vcmask 1045509
          %v845 = vsel %vm844, %v817, %v843
          %vm846 = vcmask 1046534
          %v847 = vsel %vm846, %v826, %v845
          %vm848 = vcmask 1047559
          %v849 = vsel %vm848, %v835, %v847
          %v851 = vsel %vm745, %v849, -1e+30
          %v852 = vld [vmem:[#allocation2] sm:$0xff]
          %vm853 = vcmask 130048
          %v854 = vsel %vm853, %v851, -inf
          %855 = vmax.xlane.f32.xlu0 %v854
          %v856 = vpop.xlane.xlu0 %855
          %v857 = vmax.f32 %v852, %v856
          %v858 = vsub.f32 %v852, %v857
          %v859 = vmul.f32 %v858, 1.442695
          %v860 = vpow.pop %v859
          %862 = vset.pattern.permute.xlu0 0
          %863 = vperm.xlu0 %862, %v857
          %v864 = vpop.permute.xlu0 %863
          %v866 = vsub.f32 %v851, %v864
          %v867 = vmul.f32 %v866, 1.442695
          %v868 = vpow.pop %v867
          %v869 = vld [vmem:[#allocation3] sm:$0xff]
          %v870 = vmul.f32 %v860, %v869
          %v871 = vsel %vm853, %v868, 0.0
          %872 = vadd.xlane.f32.xlu0 %v871
          %v873 = vpop.xlane.xlu0 %872
          %v874 = vadd.f32 %v870, %v873
          %vm875 = vcmask 7168
          %876 = vst.msk [vmem:[#allocation3] sm:$0xff] %vm875, %v874
          %v877 = vld [vmem:[#allocation4] sm:$0xff]
          %879 = vset.pattern.permute.xlu0 0
          %880 = vperm.xlu0 %879, %v860
          %v881 = vpop.permute.xlu0 %880
          %v883 = vmul.f32 %v881, %v877
          %v885 = vsel %vm853, %v868, 0
          %887 = vmatprep.subr.mxu0 0.0
          %888 = vmatpush1.msra.mxu0 0.0
          %889 = vmatprep.subr.mxu0 0.0
          %890 = vmatpush1.msra.mxu0 0.0
          %891 = vmatprep.subr.mxu0 0.0
          %892 = vmatpush1.msra.mxu0 0.0
          %893 = vmatprep.subr.mxu0 0.0
          %894 = vmatpush1.msra.mxu0 0.0
          %895 = vmatprep.subr.mxu0 0.0
          %896 = vmatpush1.msra.mxu0 0.0
          %897 = vmatprep.subr.mxu0 0.0
          %898 = vmatpush1.msra.mxu0 0.0
          %899 = vmatprep.subr.mxu0 0.0
          %900 = vmatpush1.msra.mxu0 0.0
          %901 = vmatprep.subr.mxu0 0.0
          %902 = vmatpush1.msra.mxu0 0.0
          %903 = vmatprep.subr.mxu0 0.0
          %904 = vmatpush1.msra.mxu0 0.0
          %905 = vmatprep.subr.mxu0 0.0
          %906 = vmatpush1.msra.mxu0 0.0
          %907 = vmatprep.subr.mxu0 0.0
          %908 = vmatpush1.msra.mxu0 0.0
          %909 = vmatprep.subr.mxu0 0.0
          %910 = vmatpush1.msra.mxu0 0.0
          %911 = vmatprep.subr.mxu0 0.0
          %912 = vmatpush1.msra.mxu0 0.0
          %913 = vmatprep.subr.mxu0 0.0
          %914 = vmatpush1.msra.mxu0 0.0
          %915 = vmatprep.subr.mxu0 0.0
          %916 = vmatpush1.msra.mxu0 %v545
          %917 = vmatprep.subr.mxu0 0.0
          %918 = vmatpush1.msra.mxu0 %v544
          %919 = vmatprep.subr.mxu0 0.0
          %920 = vmatpush2.msra.mxu0 0.0
          %921 = vmatprep.subr.mxu0 0.0
          %922 = vmatpush2.msra.mxu0 0.0
          %923 = vmatprep.subr.mxu0 0.0
          %924 = vmatpush2.msra.mxu0 0.0
          %925 = vmatprep.subr.mxu0 0.0
          %926 = vmatpush2.msra.mxu0 0.0
          %927 = vmatprep.subr.mxu0 0.0
          %928 = vmatpush2.msra.mxu0 0.0
          %929 = vmatprep.subr.mxu0 0.0
          %930 = vmatpush2.msra.mxu0 0.0
          %931 = vmatprep.subr.mxu0 0.0
          %932 = vmatpush2.msra.mxu0 0.0
          %933 = vmatprep.subr.mxu0 0.0
          %934 = vmatpush2.msra.mxu0 0.0
          %935 = vmatprep.subr.mxu0 0.0
          %936 = vmatpush2.msra.mxu0 0.0
          %937 = vmatprep.subr.mxu0 0.0
          %938 = vmatpush2.msra.mxu0 0.0
          %939 = vmatprep.subr.mxu0 0.0
          %940 = vmatpush2.msra.mxu0 0.0
          %941 = vmatprep.subr.mxu0 0.0
          %942 = vmatpush2.msra.mxu0 0.0
          %943 = vmatprep.subr.mxu0 0.0
          %944 = vmatpush2.msra.mxu0 0.0
          %945 = vmatprep.subr.mxu0 0.0
          %946 = vmatpush2.msra.mxu0 0.0
          %947 = vmatprep.subr.mxu0 0.0
          %948 = vmatpush2.msra.mxu0 0.0
          %949 = vmatprep.subr.mxu0 0.0
          %950 = vmatpush2.msra.mxu0 0.0
          %951 = vmatprep.mubr.f32.mxu0 0.0
          %952 = vmatmul.mubr.f32.gmra.mxu0 %v885
          %v953 = vpop.f32.mrf.mxu0
          %v954 = vadd.f32 0.0, %v953
          %v955 = vpop.f32.mrf.mxu0
          %956 = vdwg.mxu0
          %v957 = vadd.f32 %v883, %v954
          %958 = vst.msk [vmem:[#allocation4] sm:$0xff] %vm691, %v957
          %959 = vst.msk [vmem:[#allocation2] sm:$0xff] %vm875, %v857
        $region72: #{tpu_custom_call.1} parent=43 // pred_fallthru
          _
        // Predicated region
        $region73: #{tpu_custom_call.1} parent=43 // pred_check
          %p960 = pneg %p526
        $region74: #{tpu_custom_call.1} parent=43 // pred_check_branch
          %962 = sbr.rel (%p960) target = $region76
        $region75: #{tpu_custom_call.1} parent=43 // pred_region
          %v963 = vld [vmem:[#allocation4] sm:$0xff]
          %v964 = vld [vmem:[#allocation3] sm:$0xff]
          %v965 = vrcp.pop %v964
          %967 = vset.pattern.permute.xlu0 0
          %968 = vperm.xlu0 %967, %v965
          %v969 = vpop.permute.xlu0 %968
          %v971 = vmul.f32 %v963, %v969
          %v972 = vld [vmem:[#allocation15] sm:$0xff]
          %v973 = vld [vmem:[#allocation15 + $0x8] sm:$0xff]
          %v974 = vld [vmem:[#allocation15 + $0x10] sm:$0xff]
          %v975 = vld [vmem:[#allocation15 + $0x18] sm:$0xff]
          %v976 = vld [vmem:[%s432] sm:$0xff]
          %vm977 = vcmask 261120
          %v979 = vsel %vm977, %v971, 0
          %981 = vmatprep.subr.mxu0 0.0
          %982 = vmatpush1.msra.mxu0 0.0
          %983 = vmatprep.subr.mxu0 0.0
          %984 = vmatpush1.msra.mxu0 0.0
          %985 = vmatprep.subr.mxu0 0.0
          %986 = vmatpush1.msra.mxu0 0.0
          %987 = vmatprep.subr.mxu0 0.0
          %988 = vmatpush1.msra.mxu0 0.0
          %989 = vmatprep.subr.mxu0 0.0
          %990 = vmatpush1.msra.mxu0 0.0
          %991 = vmatprep.subr.mxu0 0.0
          %992 = vmatpush1.msra.mxu0 0.0
          %993 = vmatprep.subr.mxu0 0.0
          %994 = vmatpush1.msra.mxu0 0.0
          %995 = vmatprep.subr.mxu0 0.0
          %996 = vmatpush1.msra.mxu0 0.0
          %997 = vmatprep.subr.mxu0 0.0
          %998 = vmatpush1.msra.mxu0 0.0
          %999 = vmatprep.subr.mxu0 0.0
          %1000 = vmatpush1.msra.mxu0 0.0
          %1001 = vmatprep.subr.mxu0 0.0
          %1002 = vmatpush1.msra.mxu0 0.0
          %1003 = vmatprep.subr.mxu0 0.0
          %1004 = vmatpush1.msra.mxu0 0.0
          %1005 = vmatprep.subr.mxu0 0.0
          %1006 = vmatpush1.msra.mxu0 %v975
          %1007 = vmatprep.subr.mxu0 0.0
          %1008 = vmatpush1.msra.mxu0 %v974
          %1009 = vmatprep.subr.mxu0 0.0
          %1010 = vmatpush1.msra.mxu0 %v973
          %1011 = vmatprep.subr.mxu0 0.0
          %1012 = vmatpush1.msra.mxu0 %v972
          %1013 = vmatprep.subr.mxu0 0.0
          %1014 = vmatpush2.msra.mxu0 0.0
          %1015 = vmatprep.subr.mxu0 0.0
          %1016 = vmatpush2.msra.mxu0 0.0
          %1017 = vmatprep.subr.mxu0 0.0
          %1018 = vmatpush2.msra.mxu0 0.0
          %1019 = vmatprep.subr.mxu0 0.0
          %1020 = vmatpush2.msra.mxu0 0.0
          %1021 = vmatprep.subr.mxu0 0.0
          %1022 = vmatpush2.msra.mxu0 0.0
          %1023 = vmatprep.subr.mxu0 0.0
          %1024 = vmatpush2.msra.mxu0 0.0
          %1025 = vmatprep.subr.mxu0 0.0
          %1026 = vmatpush2.msra.mxu0 0.0
          %1027 = vmatprep.subr.mxu0 0.0
          %1028 = vmatpush2.msra.mxu0 0.0
          %1029 = vmatprep.subr.mxu0 0.0
          %1030 = vmatpush2.msra.mxu0 0.0
          %1031 = vmatprep.subr.mxu0 0.0
          %1032 = vmatpush2.msra.mxu0 0.0
          %1033 = vmatprep.subr.mxu0 0.0
          %1034 = vmatpush2.msra.mxu0 0.0
          %1035 = vmatprep.subr.mxu0 0.0
          %1036 = vmatpush2.msra.mxu0 0.0
          %1037 = vmatprep.subr.mxu0 0.0
          %1038 = vmatpush2.msra.mxu0 0.0
          %1039 = vmatprep.subr.mxu0 0.0
          %1040 = vmatpush2.msra.mxu0 0.0
          %1041 = vmatprep.subr.mxu0 0.0
          %1042 = vmatpush2.msra.mxu0 0.0
          %1043 = vmatprep.subr.mxu0 0.0
          %1044 = vmatpush2.msra.mxu0 0.0
          %1045 = vmatprep.mubr.f32.mxu0 0.0
          %1046 = vmatmul.mubr.f32.gmra.mxu0 %v979
          %v1047 = vpop.f32.mrf.mxu0
          %v1048 = vadd.f32 %v976, %v1047
          %v1049 = vpop.f32.mrf.mxu0
          %1050 = vdwg.mxu0
          %v1051 = vtanh.pop %v1048
          %1052 = vst.msk [vmem:[%s497] sm:$0xff] %vm977, %v1051
        $region76: #{tpu_custom_call.1} parent=43 // pred_fallthru
          _
        %s1053 = sand.u32 %s256, 1
        %s1054 = scalar_lea.sflag [#allocation9], %s1053
        %s1055 = sand.u32 %s256, 1
        %s1056 = smul.addr %s1055, 8
        %s1057 = scalar_lea.vmem [#allocation16], %s1056
        // Predicated region
        $region77: #{tpu_custom_call.1} parent=43 // pred_check
          %p1058 = pneg %p266
        $region78: #{tpu_custom_call.1} parent=43 // pred_check_branch
          %1060 = sbr.rel (%p1058) target = $region80
        $region79: #{tpu_custom_call.1} parent=43 // pred_region
          %s1062 = ssub.s32 128, 128
          %1063 = vsyncadd %s1054, %s1062
          %s1064 = smul.addr %s38, 128
          %s1065 = scalar_lea.hbm %s7, %s1064
          %s1067 = sshll.u32 %s1057, 4
          %s1068 = int_to_ptr.vmem [resolvable:$true] %s1067
          %1070 = dma.vmem_to_hbm [thread:$0]  %s1068, 128, %s1065, %s1054
        $region80: #{tpu_custom_call.1} parent=43 // pred_fallthru
          _
      $region44: #{tpu_custom_call.1} parent=5 // pred_fallthru
        _
      %p1071 = scmp.le.s32.totalorder 2, %s29
      // Predicated region
      $region81: #{tpu_custom_call.1} parent=5 // pred_check
        %p1072 = pneg %p1071
      $region82: #{tpu_custom_call.1} parent=5 // pred_check_branch
        %1074 = sbr.rel (%p1072) target = $region84
      $region83: #{tpu_custom_call.1} parent=5 // pred_region
        %s1075 = ssub.s32 %s29, 2
        // Predicated region
        $region85: #{tpu_custom_call.1} parent=83 // pred_check
          %p1076 = pneg %p272
        $region86: #{tpu_custom_call.1} parent=83 // pred_check_branch
          %1078 = sbr.rel (%p1076) target = $region88
        $region87: #{tpu_custom_call.1} parent=83 // pred_region
          %s1079 = sand.u32 %s257, 1
          %s1080 = scalar_lea.sflag [#allocation9], %s1079
          %s1081 = sand.u32 %s257, 1
          %s1082 = smul.addr %s1081, 8
          %s1083 = scalar_lea.vmem [#allocation16], %s1082
          %1084 = dma.done %s1080, 128
        $region88: #{tpu_custom_call.1} parent=83 // pred_fallthru
          _
      $region84: #{tpu_custom_call.1} parent=5 // pred_fallthru
        _
    $region6: #{tpu_custom_call.1} parent=1 // loop_footer
      %s33 = sadd.s32 1, %s29
    $region7: #{tpu_custom_call.1} parent=1 // loop_footer_branch
      %28 = sbr.rel target = $region3
    $region8: #{tpu_custom_call.1} parent=1 // loop_exit
      _
    %1085 = vsyncpa [#allocation8], 1
    %s1086 = scalar_lea.sflag [#allocation8], 1
    %1087 = vsyncpa %s1086, 1
    %1088 = vsyncpa [#allocation11], 1
    %s1089 = scalar_lea.sflag [#allocation11], 1
    %1090 = vsyncpa %s1089, 1
    %1091 = vsyncpa [#allocation14], 1
    %s1092 = scalar_lea.sflag [#allocation14], 1
    %1093 = vsyncpa %s1092, 1
    %1094 = vsyncpa [#allocation9], 1
    %s1095 = scalar_lea.sflag [#allocation9], 1
    %1096 = vsyncpa %s1095, 1

</llo_original>
